<compile_context>
chip_gen: v7x
topology: tpu7x:2x2x1
jax: 0.10.0
libtpu: 0.0.40
codegen_flags: <defaults>
</compile_context>

<pallas_src>
import functools

import jax
import jax.numpy as jnp
from jax.experimental import pallas as pl
from jax.experimental.pallas import tpu as pltpu


def _round_up(a: int, b: int) -> int:
    return ((a + b - 1) // b) * b


# ---------------------------------------------------------------------------
# Fused kernel: matmul + online logsumexp + in-VMEM normalization.
#   grid = (m_tiles, v_tiles); vocab (reduction) axis last, "arbitrary".
#   Output block = full (tm, n_words) row slab, resident across the vocab
#   sweep (index_map ignores j) and written back to HBM once per row tile.
# ---------------------------------------------------------------------------
def _generator_kernel(x_ref, w_ref, o_ref, acc_scr, m_scr, l_scr,
                      *, n_words, tn, v_tiles):
    j = pl.program_id(1)
    last = pl.num_programs(1) - 1

    @pl.when(j == 0)
    def _():
        m_scr[...] = jnp.full(m_scr.shape, -jnp.inf, dtype=jnp.float32)
        l_scr[...] = jnp.zeros(l_scr.shape, dtype=jnp.float32)

    # MXU matmul, f32 accumulation regardless of operand dtype.
    logits = jnp.dot(x_ref[...], w_ref[...],
                     preferred_element_type=jnp.float32)

    # Stash the raw logits tile in the VMEM-resident row slab (dynamic index
    # only on the leading scratch axis).
    acc_scr[j] = logits

    def _online_update(lg):
        tile_max = jnp.max(lg, axis=-1, keepdims=True)
        m_new = jnp.maximum(m_scr[...], tile_max)
        l_scr[...] = (l_scr[...] * jnp.exp(m_scr[...] - m_new)
                      + jnp.sum(jnp.exp(lg - m_new), axis=-1, keepdims=True))
        m_scr[...] = m_new

    if n_words % tn != 0:
        # Only the final vocab tile has padded columns; mask them there only
        # (saves an iota + cmp + select on every other grid step).
        @pl.when(j == last)
        def _():
            col = j * tn + jax.lax.broadcasted_iota(jnp.int32, logits.shape, 1)
            _online_update(jnp.where(col < n_words, logits, -jnp.inf))

        @pl.when(j != last)
        def _():
            _online_update(logits)
    else:
        _online_update(logits)

    @pl.when(j == last)
    def _():
        lse = m_scr[...] + jnp.log(l_scr[...])        # (tm, 1) f32
        # Normalize the resident slab and fill the output block; static lane
        # slices only (the last slice may be partial -> masked store).
        for jj in range(v_tiles):
            c0 = jj * tn
            c1 = min(c0 + tn, n_words)
            o_ref[:, c0:c1] = (acc_scr[jj, :, :c1 - c0] - lse).astype(o_ref.dtype)


# ---------------------------------------------------------------------------
# One-time (parameter-load-time) weight preparation — NOT jitted per call.
# ---------------------------------------------------------------------------
def prepare_generator_weight(proj_weight, *, tn=1024, matmul_dtype=None):
    """Transpose the PyTorch-layout (n_words, hidden) weight to (hidden, V),
    pad the vocab axis to a multiple of the lane tile `tn`, and optionally
    cast to the MXU operand dtype (e.g. bf16).  Returns (w_t, tn)."""
    n_words, hidden = proj_weight.shape
    tn = min(tn, _round_up(n_words, 128))
    v_pad = _round_up(n_words, tn)
    w_t = jnp.asarray(proj_weight).T                      # (hidden, n_words)
    if v_pad != n_words:
        w_t = jnp.pad(w_t, ((0, 0), (0, v_pad - n_words)))
    if matmul_dtype is not None:
        w_t = w_t.astype(matmul_dtype)
    return w_t, tn


@functools.partial(jax.jit, static_argnames=("n_words", "tn", "tm"))
def generator_forward(x, w_t, *, n_words, tn, tm=None):
    """Linear(hidden -> n_words, bias=False) followed by LogSoftmax(dim=-1).

    x:   (..., hidden)
    w_t: (hidden, v_pad) — output of prepare_generator_weight (pre-transposed,
         pre-padded, optionally pre-cast to the MXU operand dtype).
    """
    hidden, v_pad = w_t.shape
    assert x.shape[-1] == hidden
    assert v_pad % tn == 0 and tn % 128 == 0 and v_pad >= n_words

    lead_shape = x.shape[:-1]
    out_dtype = x.dtype
    matmul_dtype = w_t.dtype

    x2d = x.reshape(-1, hidden).astype(matmul_dtype)
    m = x2d.shape[0]

    # Row tile: 256 fills the 2x256^2 MXU (v6e/v7x) with bf16 operands and
    # halves the dominant W re-stream traffic; 128 for f32.  bf16 packs
    # (16, 128) per vreg, so align rows to 16 in that case.
    row_align = 16 if matmul_dtype == jnp.bfloat16 else 8
    if tm is None:
        tm = 256 if matmul_dtype == jnp.bfloat16 else 128
    tm = max(row_align, min(_round_up(tm, row_align), _round_up(m, row_align)))
    m_pad = _round_up(m, tm)
    if m_pad != m:
        x2d = jnp.pad(x2d, ((0, m_pad - m), (0, 0)))

    m_tiles = m_pad // tm
    v_tiles = v_pad // tn

    # Explicit scoped-VMEM estimate (resident slab + output block + streams).
    # NOTE for v7x (64 MiB physical VMEM): keep tm*v_pad*4 small, e.g. tm<=64
    # for V~32-50k.  v5e/v6e (128 MiB) tolerate tm=128..256.
    in_size = x2d.dtype.itemsize
    out_size = jnp.zeros((), out_dtype).dtype.itemsize
    vmem_est = (tm * v_pad * 4                 # raw-logits slab (scratch)
                + 2 * tm * n_words * out_size  # output block (double buffered)
                + 2 * hidden * tn * in_size    # streamed W tiles
                + 2 * tm * hidden * in_size    # resident x row tile
                + 4 * tm * 4)                  # running max / sum-exp
    vmem_limit = max(32 << 20, min(int(1.25 * vmem_est) + (2 << 20), 96 << 20))

    kernel = functools.partial(_generator_kernel, n_words=n_words, tn=tn,
                               v_tiles=v_tiles)
    out = pl.pallas_call(
        kernel,
        out_shape=jax.ShapeDtypeStruct((m_pad, n_words), out_dtype),
        grid_spec=pltpu.PrefetchScalarGridSpec(
            num_scalar_prefetch=0,
            grid=(m_tiles, v_tiles),
            in_specs=[
                # x row tile: invariant across the vocab sweep -> one DMA/tile.
                pl.BlockSpec((tm, hidden), lambda i, j: (i, 0)),
                # W vocab tile: streamed (double-buffered) along j.
                pl.BlockSpec((hidden, tn), lambda i, j: (0, j)),
            ],
            # Output block is the whole row slab; stays in VMEM across j and
            # is written back to HBM once per row tile.
            out_specs=pl.BlockSpec((tm, n_words), lambda i, j: (i, 0)),
            scratch_shapes=[
                pltpu.VMEM((v_tiles, tm, tn), jnp.float32),  # raw logits slab
                pltpu.VMEM((tm, 1), jnp.float32),            # running max
                pltpu.VMEM((tm, 1), jnp.float32),            # running sum-exp
            ],
        ),
        compiler_params=pltpu.CompilerParams(
            dimension_semantics=("parallel", "arbitrary"),
            vmem_limit_bytes=vmem_limit,
        ),
    )(x2d, w_t)

    if m_pad != m:
        out = out[:m]
    return out.reshape(*lead_shape, n_words)


if __name__ == "__main__":
    # Small shapes consistent with the module: Generator(n_words, hidden_size).
    # n_words=300 deliberately spans multiple vocab tiles (tn=128 in the demo)
    # and exercises the padded-last-tile masking path.
    batch, seq, hidden_size, n_words = 2, 4, 32, 300

    key = jax.random.PRNGKey(0)
    k_x, k_w = jax.random.split(key)

    # PyTorch-layout weight (n_words, hidden), embedding-style small init.
    proj_weight = 0.01 * jax.random.normal(
        k_w, (n_words, hidden_size), dtype=jnp.float32)
    x = jax.random.normal(k_x, (batch, seq, hidden_size), dtype=jnp.float32)

    # --- f32 path -----------------------------------------------------------
    # Load-time weight prep (transpose + pad [+ cast]); tn=128 here only so the
    # tiny demo vocab spans several tiles — production default is tn=1024.
    w_t, tn = prepare_generator_weight(proj_weight, tn=128)
    log_probs = generator_forward(x, w_t, n_words=n_words, tn=tn)
    jax.block_until_ready(log_probs)

    ref = jax.nn.log_softmax(x @ proj_weight.T, axis=-1)
    assert log_probs.shape == (batch, seq, n_words)
    assert jnp.allclose(log_probs, ref, atol=2e-5, rtol=2e-5), float(
        jnp.max(jnp.abs(log_probs - ref)))

    # --- bf16 MXU-operand path (f32 accumulation + f32 softmax math) --------
    w_t16, tn16 = prepare_generator_weight(proj_weight, tn=128,
                                           matmul_dtype=jnp.bfloat16)
    log_probs16 = generator_forward(x, w_t16, n_words=n_words, tn=tn16)
    jax.block_until_ready(log_probs16)

    ref16 = jax.nn.log_softmax(
        jnp.dot(x.astype(jnp.bfloat16), proj_weight.T.astype(jnp.bfloat16),
                preferred_element_type=jnp.float32), axis=-1)
    assert jnp.allclose(log_probs16, ref16, atol=2e-3, rtol=2e-3)

    print("KERNEL_OK")
</pallas_src>

<mosaic_0001>
module attributes {stable_mosaic.version = 11 : i64} {
  func.func @_generator_kernel(%arg0: i32, %arg1: i32, %arg2: memref<8x32xf32, #tpu.memory_space<vmem>>, %arg3: memref<32x128xf32, #tpu.memory_space<vmem>>, %arg4: memref<8x300xf32, #tpu.memory_space<vmem>>, %arg5: memref<3x8x128xf32, #tpu.memory_space<vmem>>, %arg6: memref<8x1xf32, #tpu.memory_space<vmem>>, %arg7: memref<8x1xf32, #tpu.memory_space<vmem>>) attributes {dimension_semantics = [#tpu.dimension_semantics<parallel>, #tpu.dimension_semantics<arbitrary>], iteration_bounds = array<i64: 1, 3>, scalar_prefetch = 0 : i64, scratch_operands = 3 : i64, tpu.core_type = #tpu.core_type<tc>, window_params = [{transform_indices = @transform_0, window_bounds = array<i64: 8, 32>}, {transform_indices = @transform_1, window_bounds = array<i64: 32, 128>}, {transform_indices = @transform_2, window_bounds = array<i64: 8, 300>}]} {
    %c0_i32 = arith.constant 0 : i32
    %0 = arith.cmpi eq, %arg1, %c0_i32 : i32
    %1 = arith.extui %0 : i1 to i32
    %c0_i32_0 = arith.constant 0 : i32
    %2 = arith.cmpi ne, %1, %c0_i32_0 : i32
    scf.if %2 {
      %cst_11 = arith.constant 0xFF800000 : f32
      %19 = vector.broadcast %cst_11 : f32 to vector<8x1xf32>
      %c0_12 = arith.constant 0 : index
      %c0_13 = arith.constant 0 : index
      %20 = vector.load %arg6[%c0_12, %c0_13] : memref<8x1xf32, #tpu.memory_space<vmem>>, vector<8x1xf32>
      tpu.vector_store %arg6[%c0_12, %c0_13], %19 {strides = array<i32>} : memref<8x1xf32, #tpu.memory_space<vmem>>, vector<8x1xf32>,
      %cst_14 = arith.constant 0.000000e+00 : f32
      %21 = vector.broadcast %cst_14 : f32 to vector<8x1xf32>
      %c0_15 = arith.constant 0 : index
      %c0_16 = arith.constant 0 : index
      %22 = vector.load %arg7[%c0_15, %c0_16] : memref<8x1xf32, #tpu.memory_space<vmem>>, vector<8x1xf32>
      tpu.vector_store %arg7[%c0_15, %c0_16], %21 {strides = array<i32>} : memref<8x1xf32, #tpu.memory_space<vmem>>, vector<8x1xf32>,
    } else {
    }
    %c0 = arith.constant 0 : index
    %c0_1 = arith.constant 0 : index
    %3 = vector.load %arg2[%c0, %c0_1] : memref<8x32xf32, #tpu.memory_space<vmem>>, vector<8x32xf32>
    %c0_2 = arith.constant 0 : index
    %c0_3 = arith.constant 0 : index
    %4 = vector.load %arg3[%c0_2, %c0_3] : memref<32x128xf32, #tpu.memory_space<vmem>>, vector<32x128xf32>
    %cst = arith.constant dense<0.000000e+00> : vector<8x128xf32>
    %5 = tpu.matmul %3, %4, %cst {dimension_numbers = #tpu.dot_dimension_numbers<[1], [0], [0], [1], [0, 0, 1, 1], [], []>} : vector<8x32xf32>, vector<32x128xf32>, vector<8x128xf32> -> vector<8x128xf32>
    %6 = arith.index_cast %arg1 : i32 to index
    %c0_4 = arith.constant 0 : index
    %c0_5 = arith.constant 0 : index
    %7 = vector.load %arg5[%6, %c0_4, %c0_5] : memref<3x8x128xf32, #tpu.memory_space<vmem>>, vector<1x8x128xf32>
    %8 = vector.shape_cast %7 : vector<1x8x128xf32> to vector<8x128xf32>
    %9 = vector.shape_cast %5 : vector<8x128xf32> to vector<1x8x128xf32>
    tpu.vector_store %arg5[%6, %c0_4, %c0_5], %9 {strides = array<i32>} : memref<3x8x128xf32, #tpu.memory_space<vmem>>, vector<1x8x128xf32>,
    %c2_i32 = arith.constant 2 : i32
    %10 = arith.cmpi eq, %arg1, %c2_i32 : i32
    %11 = arith.extui %10 : i1 to i32
    %c0_i32_6 = arith.constant 0 : i32
    %12 = arith.cmpi ne, %11, %c0_i32_6 : i32
    scf.if %12 {
      %c128_i32 = arith.constant 128 : i32
      %19 = arith.muli %arg1, %c128_i32 : i32
      %20 = tpu.iota {dimensions = array<i32: 1>} : vector<8x128xi32>
      %21 = vector.broadcast %19 : i32 to vector<8x128xi32>
      %22 = arith.addi %21, %20 : vector<8x128xi32>
      %c300_i32 = arith.constant 300 : i32
      %23 = vector.broadcast %c300_i32 : i32 to vector<8x128xi32>
      %24 = arith.cmpi slt, %22, %23 : vector<8x128xi32>
      %cst_11 = arith.constant 0xFF800000 : f32
      %25 = vector.broadcast %cst_11 : f32 to vector<8x128xf32>
      %26 = arith.select %24, %5, %25 : vector<8x128xi1>, vector<8x128xf32>
      %cst_12 = arith.constant dense<0xFF800000> : vector<8xf32>
      %27 = vector.multi_reduction <maximumf>, %26, %cst_12 [1] : vector<8x128xf32> to vector<8xf32>
      %28 = vector.shape_cast %27 : vector<8xf32> to vector<8x1xf32>
      %c0_13 = arith.constant 0 : index
      %c0_14 = arith.constant 0 : index
      %29 = vector.load %arg6[%c0_13, %c0_14] : memref<8x1xf32, #tpu.memory_space<vmem>>, vector<8x1xf32>
      %30 = arith.maximumf %29, %28 : vector<8x1xf32>
      %c0_15 = arith.constant 0 : index
      %c0_16 = arith.constant 0 : index
      %31 = vector.load %arg7[%c0_15, %c0_16] : memref<8x1xf32, #tpu.memory_space<vmem>>, vector<8x1xf32>
      %c0_17 = arith.constant 0 : index
      %c0_18 = arith.constant 0 : index
      %32 = vector.load %arg6[%c0_17, %c0_18] : memref<8x1xf32, #tpu.memory_space<vmem>>, vector<8x1xf32>
      %33 = arith.subf %32, %30 : vector<8x1xf32>
      %34 = math.exp %33 : vector<8x1xf32>
      %35 = arith.mulf %31, %34 : vector<8x1xf32>
      %36 = vector.broadcast %30 : vector<8x1xf32> to vector<8x128xf32>
      %37 = arith.subf %26, %36 : vector<8x128xf32>
      %38 = math.exp %37 : vector<8x128xf32>
      %cst_19 = arith.constant dense<0.000000e+00> : vector<8xf32>
      %39 = vector.multi_reduction <add>, %38, %cst_19 [1] : vector<8x128xf32> to vector<8xf32>
      %40 = vector.shape_cast %39 : vector<8xf32> to vector<8x1xf32>
      %41 = arith.addf %35, %40 : vector<8x1xf32>
      %c0_20 = arith.constant 0 : index
      %c0_21 = arith.constant 0 : index
      %42 = vector.load %arg7[%c0_20, %c0_21] : memref<8x1xf32, #tpu.memory_space<vmem>>, vector<8x1xf32>
      tpu.vector_store %arg7[%c0_20, %c0_21], %41 {strides = array<i32>} : memref<8x1xf32, #tpu.memory_space<vmem>>, vector<8x1xf32>,
      %c0_22 = arith.constant 0 : index
      %c0_23 = arith.constant 0 : index
      %43 = vector.load %arg6[%c0_22, %c0_23] : memref<8x1xf32, #tpu.memory_space<vmem>>, vector<8x1xf32>
      tpu.vector_store %arg6[%c0_22, %c0_23], %30 {strides = array<i32>} : memref<8x1xf32, #tpu.memory_space<vmem>>, vector<8x1xf32>,
    } else {
    }
    %c2_i32_7 = arith.constant 2 : i32
    %13 = arith.cmpi ne, %arg1, %c2_i32_7 : i32
    %14 = arith.extui %13 : i1 to i32
    %c0_i32_8 = arith.constant 0 : i32
    %15 = arith.cmpi ne, %14, %c0_i32_8 : i32
    scf.if %15 {
      %cst_11 = arith.constant dense<0xFF800000> : vector<8xf32>
      %19 = vector.multi_reduction <maximumf>, %5, %cst_11 [1] : vector<8x128xf32> to vector<8xf32>
      %20 = vector.shape_cast %19 : vector<8xf32> to vector<8x1xf32>
      %c0_12 = arith.constant 0 : index
      %c0_13 = arith.constant 0 : index
      %21 = vector.load %arg6[%c0_12, %c0_13] : memref<8x1xf32, #tpu.memory_space<vmem>>, vector<8x1xf32>
      %22 = arith.maximumf %21, %20 : vector<8x1xf32>
      %c0_14 = arith.constant 0 : index
      %c0_15 = arith.constant 0 : index
      %23 = vector.load %arg7[%c0_14, %c0_15] : memref<8x1xf32, #tpu.memory_space<vmem>>, vector<8x1xf32>
      %c0_16 = arith.constant 0 : index
      %c0_17 = arith.constant 0 : index
      %24 = vector.load %arg6[%c0_16, %c0_17] : memref<8x1xf32, #tpu.memory_space<vmem>>, vector<8x1xf32>
      %25 = arith.subf %24, %22 : vector<8x1xf32>
      %26 = math.exp %25 : vector<8x1xf32>
      %27 = arith.mulf %23, %26 : vector<8x1xf32>
      %28 = vector.broadcast %22 : vector<8x1xf32> to vector<8x128xf32>
      %29 = arith.subf %5, %28 : vector<8x128xf32>
      %30 = math.exp %29 : vector<8x128xf32>
      %cst_18 = arith.constant dense<0.000000e+00> : vector<8xf32>
      %31 = vector.multi_reduction <add>, %30, %cst_18 [1] : vector<8x128xf32> to vector<8xf32>
      %32 = vector.shape_cast %31 : vector<8xf32> to vector<8x1xf32>
      %33 = arith.addf %27, %32 : vector<8x1xf32>
      %c0_19 = arith.constant 0 : index
      %c0_20 = arith.constant 0 : index
      %34 = vector.load %arg7[%c0_19, %c0_20] : memref<8x1xf32, #tpu.memory_space<vmem>>, vector<8x1xf32>
      tpu.vector_store %arg7[%c0_19, %c0_20], %33 {strides = array<i32>} : memref<8x1xf32, #tpu.memory_space<vmem>>, vector<8x1xf32>,
      %c0_21 = arith.constant 0 : index
      %c0_22 = arith.constant 0 : index
      %35 = vector.load %arg6[%c0_21, %c0_22] : memref<8x1xf32, #tpu.memory_space<vmem>>, vector<8x1xf32>
      tpu.vector_store %arg6[%c0_21, %c0_22], %22 {strides = array<i32>} : memref<8x1xf32, #tpu.memory_space<vmem>>, vector<8x1xf32>,
    } else {
    }
    %c2_i32_9 = arith.constant 2 : i32
    %16 = arith.cmpi eq, %arg1, %c2_i32_9 : i32
    %17 = arith.extui %16 : i1 to i32
    %c0_i32_10 = arith.constant 0 : i32
    %18 = arith.cmpi ne, %17, %c0_i32_10 : i32
    scf.if %18 {
      %c0_11 = arith.constant 0 : index
      %c0_12 = arith.constant 0 : index
      %19 = vector.load %arg6[%c0_11, %c0_12] : memref<8x1xf32, #tpu.memory_space<vmem>>, vector<8x1xf32>
      %c0_13 = arith.constant 0 : index
      %c0_14 = arith.constant 0 : index
      %20 = vector.load %arg7[%c0_13, %c0_14] : memref<8x1xf32, #tpu.memory_space<vmem>>, vector<8x1xf32>
      %21 = math.log %20 : vector<8x1xf32>
      %22 = arith.addf %19, %21 : vector<8x1xf32>
      %c0_15 = arith.constant 0 : index
      %c0_16 = arith.constant 0 : index
      %c0_17 = arith.constant 0 : index
      %23 = vector.load %arg5[%c0_15, %c0_16, %c0_17] : memref<3x8x128xf32, #tpu.memory_space<vmem>>, vector<1x8x128xf32>
      %24 = vector.shape_cast %23 : vector<1x8x128xf32> to vector<8x128xf32>
      %25 = vector.broadcast %22 : vector<8x1xf32> to vector<8x128xf32>
      %26 = arith.subf %24, %25 : vector<8x128xf32>
      %c0_18 = arith.constant 0 : index
      %c0_19 = arith.constant 0 : index
      %27 = vector.load %arg4[%c0_18, %c0_19] : memref<8x300xf32, #tpu.memory_space<vmem>>, vector<8x128xf32>
      tpu.vector_store %arg4[%c0_18, %c0_19], %26 {strides = array<i32>} : memref<8x300xf32, #tpu.memory_space<vmem>>, vector<8x128xf32>,
      %c1 = arith.constant 1 : index
      %c0_20 = arith.constant 0 : index
      %c0_21 = arith.constant 0 : index
      %28 = vector.load %arg5[%c1, %c0_20, %c0_21] : memref<3x8x128xf32, #tpu.memory_space<vmem>>, vector<1x8x128xf32>
      %29 = vector.shape_cast %28 : vector<1x8x128xf32> to vector<8x128xf32>
      %30 = vector.broadcast %22 : vector<8x1xf32> to vector<8x128xf32>
      %31 = arith.subf %29, %30 : vector<8x128xf32>
      %c0_22 = arith.constant 0 : index
      %c128 = arith.constant 128 : index
      %32 = vector.load %arg4[%c0_22, %c128] : memref<8x300xf32, #tpu.memory_space<vmem>>, vector<8x128xf32>
      tpu.vector_store %arg4[%c0_22, %c128], %31 {strides = array<i32>} : memref<8x300xf32, #tpu.memory_space<vmem>>, vector<8x128xf32>,
      %c2 = arith.constant 2 : index
      %c0_23 = arith.constant 0 : index
      %c0_24 = arith.constant 0 : index
      %33 = vector.load %arg5[%c2, %c0_23, %c0_24] : memref<3x8x128xf32, #tpu.memory_space<vmem>>, vector<1x8x44xf32>
      %34 = vector.shape_cast %33 : vector<1x8x44xf32> to vector<8x44xf32>
      %35 = vector.broadcast %22 : vector<8x1xf32> to vector<8x44xf32>
      %36 = arith.subf %34, %35 : vector<8x44xf32>
      %c0_25 = arith.constant 0 : index
      %c256 = arith.constant 256 : index
      %37 = vector.load %arg4[%c0_25, %c256] : memref<8x300xf32, #tpu.memory_space<vmem>>, vector<8x44xf32>
      tpu.vector_store %arg4[%c0_25, %c256], %36 {strides = array<i32>} : memref<8x300xf32, #tpu.memory_space<vmem>>, vector<8x44xf32>,
    } else {
    }
    return
  }
  func.func @transform_0(%arg0: i32, %arg1: i32) -> (i32, i32) {
    %c0_i32 = arith.constant 0 : i32
    %c0_i32_0 = arith.constant 0 : i32
    return %arg0, %c0_i32 : i32, i32
  }
  func.func @transform_1(%arg0: i32, %arg1: i32) -> (i32, i32) {
    %c0_i32 = arith.constant 0 : i32
    %c0_i32_0 = arith.constant 0 : i32
    return %c0_i32, %arg1 : i32, i32
  }
  func.func @transform_2(%arg0: i32, %arg1: i32) -> (i32, i32) {
    %c0_i32 = arith.constant 0 : i32
    %c0_i32_0 = arith.constant 0 : i32
    return %arg0, %c0_i32 : i32, i32
  }
}

</mosaic_0001>

<llo_original>
// kernel: generator_forward.1
$region0: #{generator_forward.1}
  #allocation0 [shape = 'u32[]', space=smem, size = 0x4, offset = 0x4, fixed_abs, tag = 'smem constant byte address 0x4 - core index']
  #allocation1 [shape = 'u32[144,128]{1,0:T(1,128)}', space=vmem, size = 0x12000, scoped, tag = 'internal scratch']
  #allocation2 [shape = 'f32[3,8,128]{2,1,0:T(8,128)}', space=vmem, size = 0x3000, scoped, tag = 'scratch operand']
  #allocation3 [shape = 'f32[8,1]{1,0:T(8,128)}', space=vmem, size = 0x1000, scoped, tag = 'scratch operand']
  #allocation4 [shape = 'f32[8,1]{1,0:T(8,128)}', space=vmem, size = 0x1000, scoped, tag = 'scratch operand']
  %s0 = inlined_call_operand.hbm [shape: f32[8,32], index: 0, kind: input, shape index: {}]
  %s1 = inlined_call_operand.hbm [shape: f32[32,384], index: 1, kind: input, shape index: {}]
  %s2 = inlined_call_operand.vmem [shape: f32[8,300], index: 2, kind: output, shape index: {}]
  %s3 = sld [smem:[#allocation0]]
  $region65: #{generator_forward.1} parent=0
    _
  %s5 = ssub.s32 1, %s3
  %s6 = scalar_select 0, %s5, %s3
  $region1: #{generator_forward.1} parent=0
    #allocation5 [shape = 'u8[4096]{0}', space=vmem, size = 0x1000, scoped, tag = 'input window, operand 0, single buffered']
    #allocation6 [shape = 's32[2]{0}', space=sflag, size = 0x8, scoped, tag = 'scoped memory for generator_forward.1']
    #allocation7 [shape = 'u8[32768]{0}', space=vmem, size = 0x8000, scoped, tag = 'input window, operand 1']
    #allocation8 [shape = 's32[2]{0}', space=sflag, size = 0x8, scoped, tag = 'scoped memory for generator_forward.1']
    %7 = vsyncpa [#allocation6], 0
    %8 = vsyncpa [#allocation8], 0
    %s9 = scalar_lea.sflag [#allocation8], 1
    %10 = vsyncpa %s9, 0
    loop: start=0, step=1, limit=5
    $region2: #{generator_forward.1} parent=1 // loop_pre_header
      _
    $region3: #{generator_forward.1} parent=1 // loop_header
      %s12 = sphi 0, %s16
      %p13 = scmp.ge.s32.totalorder %s12, 5
      %s19 = sphi 0, %s31
      %s20 = sphi 0, %s27
      %s21 = sphi 0, %s19
      %s22 = sphi 0, %s20
      %s23 = sphi 0, %s21
      %s24 = sphi 0, %s22
      %s34 = sphi 0, %s36
      %s37 = sphi 0, %s34
      %s38 = sphi 0, %s37
      %s54 = sphi 0, %s38
      %s60 = sphi 0, %s62
      %s63 = sphi 0, %s60
      %s64 = sphi 0, %s63
      %s80 = sphi 0, %s64
      %s86 = sphi 0, %s88
      %s89 = sphi 0, %s86
      %s90 = sphi 0, %s89
      %s106 = sphi 0, %s90
    $region4: #{generator_forward.1} parent=1 // loop_header_branch
      %15 = sbr.rel (%p13) target = $region8
    $region5: #{generator_forward.1} parent=1 // loop_body
      %s17 = ssub.s32 %s12, 1
      %s18 = ssub.s32 %s12, 2
      %s25 = sadd.s32 1, %s20
      %p26 = scmp.ge.s32.totalorder %s25, 3
      %s27 = scalar_select %p26, 0, %s25
      %s28 = sadd.s32 1, %s19
      %s29 = scalar_select %p26, %s28, %s19
      %p30 = scmp.ge.s32.totalorder %s29, 1
      %s31 = scalar_select %p30, 0, %s29
      %s32 = ssub.s32 %s19, %s31
      %p33 = scmp.eq.s32.totalorder %s32, 0
      %s35 = sadd.s32 %s34, 1
      %s36 = scalar_select %p33, %s34, %s35
      %p39 = pneg %p33
      %p40 = scmp.eq.s32.totalorder %s12, 2
      %p41 = por %p39, %p40
      %p42 = scmp.ne.s32.totalorder %s34, %s37
      %p43 = scmp.eq.s32.totalorder %s12, 0
      %p44 = por %p42, %p43
      %p45 = scmp.ne.s32.totalorder %s34, %s37
      %p46 = scmp.eq.s32.totalorder %s17, 2
      %p47 = por %p45, %p46
      %p48 = scmp.ne.s32.totalorder %s37, %s38
      %p49 = scmp.eq.s32.totalorder %s17, 0
      %p50 = por %p48, %p49
      %p51 = scmp.ne.s32.totalorder %s37, %s38
      %p52 = scmp.eq.s32.totalorder %s18, 2
      %p53 = por %p51, %p52
      %p55 = scmp.ne.s32.totalorder %s38, %s54
      %p56 = scmp.eq.s32.totalorder %s18, 0
      %p57 = por %p55, %p56
      %s58 = ssub.s32 %s20, %s27
      %p59 = scmp.eq.s32.totalorder %s58, 0
      %s61 = sadd.s32 %s60, 1
      %s62 = scalar_select %p59, %s60, %s61
      %p65 = pneg %p59
      %p66 = scmp.eq.s32.totalorder %s12, 2
      %p67 = por %p65, %p66
      %p68 = scmp.ne.s32.totalorder %s60, %s63
      %p69 = scmp.eq.s32.totalorder %s12, 0
      %p70 = por %p68, %p69
      %p71 = scmp.ne.s32.totalorder %s60, %s63
      %p72 = scmp.eq.s32.totalorder %s17, 2
      %p73 = por %p71, %p72
      %p74 = scmp.ne.s32.totalorder %s63, %s64
      %p75 = scmp.eq.s32.totalorder %s17, 0
      %p76 = por %p74, %p75
      %p77 = scmp.ne.s32.totalorder %s63, %s64
      %p78 = scmp.eq.s32.totalorder %s18, 2
      %p79 = por %p77, %p78
      %p81 = scmp.ne.s32.totalorder %s64, %s80
      %p82 = scmp.eq.s32.totalorder %s18, 0
      %p83 = por %p81, %p82
      %s84 = ssub.s32 %s19, %s31
      %p85 = scmp.eq.s32.totalorder %s84, 0
      %s87 = sadd.s32 %s86, 1
      %s88 = scalar_select %p85, %s86, %s87
      %p91 = pneg %p85
      %p92 = scmp.eq.s32.totalorder %s12, 2
      %p93 = por %p91, %p92
      %p94 = scmp.ne.s32.totalorder %s86, %s89
      %p95 = scmp.eq.s32.totalorder %s12, 0
      %p96 = por %p94, %p95
      %p97 = scmp.ne.s32.totalorder %s86, %s89
      %p98 = scmp.eq.s32.totalorder %s17, 2
      %p99 = por %p97, %p98
      %p100 = scmp.ne.s32.totalorder %s89, %s90
      %p101 = scmp.eq.s32.totalorder %s17, 0
      %p102 = por %p100, %p101
      %p103 = scmp.ne.s32.totalorder %s89, %s90
      %p104 = scmp.eq.s32.totalorder %s18, 2
      %p105 = por %p103, %p104
      %p107 = scmp.ne.s32.totalorder %s90, %s106
      %p108 = scmp.eq.s32.totalorder %s18, 0
      %p109 = por %p107, %p108
      %p110 = scmp.le.s32.totalorder 1, %s12
      %p111 = scmp.lt.s32.totalorder %s12, 4
      %p112 = pnand %p110, %p111
      %p113 = pneg %p112
      // Predicated region
      $region9: #{generator_forward.1} parent=5 // pred_check
        _
      $region10: #{generator_forward.1} parent=5 // pred_check_branch
        %115 = sbr.rel (%p112) target = $region12
      $region11: #{generator_forward.1} parent=5 // pred_region
        %s116 = ssub.s32 %s12, 1
        // Predicated region
        $region13: #{generator_forward.1} parent=11 // pred_check
          %p117 = pneg %p50
        $region14: #{generator_forward.1} parent=11 // pred_check_branch
          %119 = sbr.rel (%p117) target = $region16
        $region15: #{generator_forward.1} parent=11 // pred_region
          %s121 = ssub.s32 128, 128
          %122 = vsyncadd [#allocation6], %s121
          %s123 = smul.addr %s21, 128
          %s124 = scalar_lea.hbm %s0, %s123
          %s126 = sshll.u32 [#allocation5], 4
          %s127 = int_to_ptr.vmem [resolvable:$true] %s126
          %129 = dma.hbm_to_vmem [thread:$0]  %s124, 128, %s127, [#allocation6]
        $region16: #{generator_forward.1} parent=11 // pred_fallthru
          _
      $region12: #{generator_forward.1} parent=5 // pred_fallthru
        _
      %p130 = scmp.lt.s32.totalorder %s12, 3
      // Predicated region
      $region17: #{generator_forward.1} parent=5 // pred_check
        %p131 = pneg %p130
      $region18: #{generator_forward.1} parent=5 // pred_check_branch
        %133 = sbr.rel (%p131) target = $region20
      $region19: #{generator_forward.1} parent=5 // pred_region
        // Predicated region
        $region21: #{generator_forward.1} parent=19 // pred_check
          %p134 = pneg %p70
        $region22: #{generator_forward.1} parent=19 // pred_check_branch
          %136 = sbr.rel (%p134) target = $region24
        $region23: #{generator_forward.1} parent=19 // pred_region
          %s137 = sand.u32 %s60, 1
          %s138 = scalar_lea.sflag [#allocation8], %s137
          %s139 = sand.u32 %s60, 1
          %s140 = smul.addr %s139, 32
          %s141 = scalar_lea.vmem [#allocation7], %s140
          %s143 = ssub.s32 512, 512
          %144 = vsyncadd %s138, %s143
          %s145 = smul.addr %s20, 128
          %s146 = scalar_lea.hbm %s1, %s145
          %s147 = sshll.u32 %s141, 4
          %s148 = int_to_ptr.vmem [resolvable:$true] %s147
          %153 = dma.hbm_to_vmem [thread:$0]  %s146, 512, %s148, %s138, 384, 128, 8
        $region24: #{generator_forward.1} parent=19 // pred_fallthru
          _
      $region20: #{generator_forward.1} parent=5 // pred_fallthru
        _
      %p154 = scmp.le.s32.totalorder 1, %s12
      %p155 = scmp.lt.s32.totalorder %s12, 4
      %p156 = pnand %p154, %p155
      %p157 = pneg %p156
      // Predicated region
      $region25: #{generator_forward.1} parent=5 // pred_check
        _
      $region26: #{generator_forward.1} parent=5 // pred_check_branch
        %159 = sbr.rel (%p156) target = $region28
      $region27: #{generator_forward.1} parent=5 // pred_region
        %s160 = ssub.s32 %s12, 1
        // Predicated region
        $region29: #{generator_forward.1} parent=27 // pred_check
          %p161 = pneg %p50
        $region30: #{generator_forward.1} parent=27 // pred_check_branch
          %163 = sbr.rel (%p161) target = $region32
        $region31: #{generator_forward.1} parent=27 // pred_region
          %164 = dma.done [#allocation6], 128
        $region32: #{generator_forward.1} parent=27 // pred_fallthru
          _
        %s165 = sand.u32 %s63, 1
        %s166 = scalar_lea.sflag [#allocation8], %s165
        %s167 = sand.u32 %s63, 1
        %s168 = smul.addr %s167, 32
        %s169 = scalar_lea.vmem [#allocation7], %s168
        // Predicated region
        $region33: #{generator_forward.1} parent=27 // pred_check
          %p170 = pneg %p76
        $region34: #{generator_forward.1} parent=27 // pred_check_branch
          %172 = sbr.rel (%p170) target = $region36
        $region35: #{generator_forward.1} parent=27 // pred_region
          %173 = dma.done %s166, 512
        $region36: #{generator_forward.1} parent=27 // pred_fallthru
          _
        %p174 = pneg %p50
        %p175 = pneg %p47
        %s176 = sand.u32 %s63, 1
        %s177 = scalar_lea.sflag [#allocation8], %s176
        %s178 = sand.u32 %s63, 1
        %s179 = smul.addr %s178, 32
        %s180 = scalar_lea.vmem [#allocation7], %s179
        %p181 = pneg %p76
        %p182 = pneg %p73
        %p183 = pneg %p102
        %p184 = pneg %p99
        %p185 = scmp.lt.s32.totalorder %s21, 0
        %s186 = scalar_select %p185, %s21, 0
        %s187 = smul.addr %s186, 3
        %s188 = smul.addr %s187, 8
        %s189 = scalar_lea.vmem %s2, %s188
        %p190 = scmp.lt.s32.totalorder %s21, 0
        %s191 = scalar_select %p190, %s21, 0
        %s192 = smul.addr %s191, 3
        %s193 = smul.addr %s192, 8
        %s194 = scalar_lea.vmem %s2, %s193
        %p195 = scmp.eq.s32.totalorder %s22, 0
        // Predicated region
        $region37: #{generator_forward.1} parent=27 // pred_check
          %p196 = pneg %p195
        $region38: #{generator_forward.1} parent=27 // pred_check_branch
          %198 = sbr.rel (%p196) target = $region40
        $region39: #{generator_forward.1} parent=27 // pred_region
          %vm199 = vcmask 7168
          %200 = vst.msk [vmem:[#allocation3] sm:$0xff] %vm199, -inf
          %201 = vst.msk [vmem:[#allocation4] sm:$0xff] %vm199, 0.0
        $region40: #{generator_forward.1} parent=27 // pred_fallthru
          _
        %v202 = vld [vmem:[#allocation5] sm:$0xff]
        %v203 = vld [vmem:[%s169] sm:$0xff]
        %v204 = vld [vmem:[%s169 + $0x8] sm:$0xff]
        %v205 = vld [vmem:[%s169 + $0x10] sm:$0xff]
        %v206 = vld [vmem:[%s169 + $0x18] sm:$0xff]
        %vm207 = vcmask 261120
        %v209 = vsel %vm207, %v202, 0
        %211 = vmatprep.subr.mxu0 0.0
        %212 = vmatpush1.msra.mxu0 %v203
        %213 = vmatprep.subr.mxu0 0.0
        %214 = vmatpush1.msra.mxu0 %v204
        %215 = vmatprep.subr.mxu0 0.0
        %216 = vmatpush1.msra.mxu0 %v205
        %217 = vmatprep.subr.mxu0 0.0
        %218 = vmatpush1.msra.mxu0 %v206
        %219 = vmatprep.subr.mxu0 0.0
        %220 = vmatpush1.msra.mxu0 0.0
        %221 = vmatprep.subr.mxu0 0.0
        %222 = vmatpush1.msra.mxu0 0.0
        %223 = vmatprep.subr.mxu0 0.0
        %224 = vmatpush1.msra.mxu0 0.0
        %225 = vmatprep.subr.mxu0 0.0
        %226 = vmatpush1.msra.mxu0 0.0
        %227 = vmatprep.subr.mxu0 0.0
        %228 = vmatpush1.msra.mxu0 0.0
        %229 = vmatprep.subr.mxu0 0.0
        %230 = vmatpush1.msra.mxu0 0.0
        %231 = vmatprep.subr.mxu0 0.0
        %232 = vmatpush1.msra.mxu0 0.0
        %233 = vmatprep.subr.mxu0 0.0
        %234 = vmatpush1.msra.mxu0 0.0
        %235 = vmatprep.subr.mxu0 0.0
        %236 = vmatpush1.msra.mxu0 0.0
        %237 = vmatprep.subr.mxu0 0.0
        %238 = vmatpush1.msra.mxu0 0.0
        %239 = vmatprep.subr.mxu0 0.0
        %240 = vmatpush1.msra.mxu0 0.0
        %241 = vmatprep.subr.mxu0 0.0
        %242 = vmatpush1.msra.mxu0 0.0
        %243 = vmatprep.subr.mxu0 0.0
        %244 = vmatpush1.msra.mxu0 0.0
        %245 = vmatprep.subr.mxu0 0.0
        %246 = vmatpush1.msra.mxu0 0.0
        %247 = vmatprep.subr.mxu0 0.0
        %248 = vmatpush1.msra.mxu0 0.0
        %249 = vmatprep.subr.mxu0 0.0
        %250 = vmatpush1.msra.mxu0 0.0
        %251 = vmatprep.subr.mxu0 0.0
        %252 = vmatpush1.msra.mxu0 0.0
        %253 = vmatprep.subr.mxu0 0.0
        %254 = vmatpush1.msra.mxu0 0.0
        %255 = vmatprep.subr.mxu0 0.0
        %256 = vmatpush1.msra.mxu0 0.0
        %257 = vmatprep.subr.mxu0 0.0
        %258 = vmatpush1.msra.mxu0 0.0
        %259 = vmatprep.subr.mxu0 0.0
        %260 = vmatpush1.msra.mxu0 0.0
        %261 = vmatprep.subr.mxu0 0.0
        %262 = vmatpush1.msra.mxu0 0.0
        %263 = vmatprep.subr.mxu0 0.0
        %264 = vmatpush1.msra.mxu0 0.0
        %265 = vmatprep.subr.mxu0 0.0
        %266 = vmatpush1.msra.mxu0 0.0
        %267 = vmatprep.subr.mxu0 0.0
        %268 = vmatpush1.msra.mxu0 0.0
        %269 = vmatprep.subr.mxu0 0.0
        %270 = vmatpush1.msra.mxu0 0.0
        %271 = vmatprep.subr.mxu0 0.0
        %272 = vmatpush1.msra.mxu0 0.0
        %273 = vmatprep.subr.mxu0 0.0
        %274 = vmatpush1.msra.mxu0 0.0
        %275 = vmatprep.mubr.f32.mxu0 0.0
        %276 = vmatmul.mubr.f32.gmra.mrb[0].mxu0 %v209
        %v277 = vpop.f32.mrb[0].mxu0
        %v278 = vadd.f32 0.0, %v277
        %v279 = vpop.f32.mrb[0].mxu0
        %280 = vdwg.mxu0
        %s281 = smul.u32 %s22, 8
        %s282 = scalar_lea.vmem [#allocation2], %s281
        %283 = vst [vmem:[%s282] sm:$0xff] %v278
        %p284 = scmp.eq.s32.totalorder %s22, 2
        // Predicated region
        $region41: #{generator_forward.1} parent=27 // pred_check
          %p285 = pneg %p284
        $region42: #{generator_forward.1} parent=27 // pred_check_branch
          %287 = sbr.rel (%p285) target = $region44
        $region43: #{generator_forward.1} parent=27 // pred_region
          %s288 = smul.u32 %s22, 128
          %v289 = vlaneseq
          %v290 = vand.u32 %v289, 127
          %v291 = vstv %s288
          %v292 = vadd.s32 %v291, %v290
          %vm293 = vcmp.lt.s32.totalorder %v292, 300
          %v294 = vsel %vm293, %v278, -inf
          %295 = vmax.xlane.f32.xlu0 %v294
          %v296 = vpop.xlane.xlu0 %295
          %v297 = vld [vmem:[#allocation3] sm:$0xff]
          %v298 = vmax.f32 %v297, %v296
          %v299 = vld [vmem:[#allocation4] sm:$0xff]
          %v300 = vsub.f32 %v297, %v298
          %v301 = vmul.f32 %v300, 1.442695
          %v302 = vpow.pop %v301
          %v303 = vmul.f32 %v299, %v302
          %305 = vset.pattern.permute.xlu0 0
          %306 = vperm.xlu0 %305, %v298
          %v307 = vpop.permute.xlu0 %306
          %v309 = vsub.f32 %v294, %v307
          %v310 = vmul.f32 %v309, 1.442695
          %v311 = vpow.pop %v310
          %312 = vadd.xlane.f32.xlu0 %v311
          %v313 = vpop.xlane.xlu0 %312
          %v314 = vadd.f32 %v303, %v313
          %vm315 = vcmask 7168
          %316 = vst.msk [vmem:[#allocation4] sm:$0xff] %vm315, %v314
          %317 = vst.msk [vmem:[#allocation3] sm:$0xff] %vm315, %v298
        $region44: #{generator_forward.1} parent=27 // pred_fallthru
          _
        %p318 = scmp.ne.s32.totalorder %s22, 2
        // Predicated region
        $region45: #{generator_forward.1} parent=27 // pred_check
          %p319 = pneg %p318
        $region46: #{generator_forward.1} parent=27 // pred_check_branch
          %321 = sbr.rel (%p319) target = $region48
        $region47: #{generator_forward.1} parent=27 // pred_region
          %322 = vmax.xlane.f32.xlu0 %v278
          %v323 = vpop.xlane.xlu0 %322
          %v324 = vld [vmem:[#allocation3] sm:$0xff]
          %v325 = vmax.f32 %v324, %v323
          %v326 = vld [vmem:[#allocation4] sm:$0xff]
          %v327 = vsub.f32 %v324, %v325
          %v328 = vmul.f32 %v327, 1.442695
          %v329 = vpow.pop %v328
          %v330 = vmul.f32 %v326, %v329
          %332 = vset.pattern.permute.xlu0 0
          %333 = vperm.xlu0 %332, %v325
          %v334 = vpop.permute.xlu0 %333
          %v336 = vsub.f32 %v278, %v334
          %v337 = vmul.f32 %v336, 1.442695
          %v338 = vpow.pop %v337
          %339 = vadd.xlane.f32.xlu0 %v338
          %v340 = vpop.xlane.xlu0 %339
          %v341 = vadd.f32 %v330, %v340
          %vm342 = vcmask 7168
          %343 = vst.msk [vmem:[#allocation4] sm:$0xff] %vm342, %v341
          %344 = vst.msk [vmem:[#allocation3] sm:$0xff] %vm342, %v325
        $region48: #{generator_forward.1} parent=27 // pred_fallthru
          _
        // Predicated region
        $region49: #{generator_forward.1} parent=27 // pred_check
          %p345 = pneg %p284
        $region50: #{generator_forward.1} parent=27 // pred_check_branch
          %347 = sbr.rel (%p345) target = $region52
        $region51: #{generator_forward.1} parent=27 // pred_region
          %v348 = vld [vmem:[#allocation3] sm:$0xff]
          %v349 = vld [vmem:[#allocation4] sm:$0xff]
          %v350 = vlog2.pop %v349
          %v351 = vmul.f32 %v350, 0.6931472
          %v352 = vadd.f32 %v348, %v351
          %v353 = vld [vmem:[#allocation2] sm:$0xff]
          %355 = vset.pattern.permute.xlu0 0
          %356 = vperm.xlu0 %355, %v352
          %v357 = vpop.permute.xlu0 %356
          %v359 = vsub.f32 %v353, %v357
          %360 = vst [vmem:[%s194] sm:$0xff] %v359
          %s361 = scalar_lea.vmem [#allocation2], 8
          %v362 = vld [vmem:[%s361] sm:$0xff]
          %v363 = vsub.f32 %v362, %v357
          %364 = vst [vmem:[%s194 + $0x8] sm:$0xff] %v363
          %s365 = scalar_lea.vmem [#allocation2], 16
          %v366 = vld [vmem:[%s365] sm:$0xff]
          %v367 = vsub.f32 %v366, %v357
          %vm368 = vcmask 359424
          %369 = vst.msk [vmem:[%s194 + $0x10] sm:$0xff] %vm368, %v367
        $region52: #{generator_forward.1} parent=27 // pred_fallthru
          _
        %p370 = scmp.lt.s32.totalorder %s21, 0
        %s371 = scalar_select %p370, %s21, 0
        %s372 = smul.addr %s371, 3
        %s373 = smul.addr %s372, 8
        %s374 = scalar_lea.vmem %s2, %s373
        // Predicated region
        $region53: #{generator_forward.1} parent=27 // pred_check
          %p375 = pneg %p99
        $region54: #{generator_forward.1} parent=27 // pred_check_branch
          %377 = sbr.rel (%p375) target = $region56
        $region55: #{generator_forward.1} parent=27 // pred_region
          _
        $region56: #{generator_forward.1} parent=27 // pred_fallthru
          _
        // Predicated region
        $region57: #{generator_forward.1} parent=27 // pred_check
          %p378 = pneg %p99
        $region58: #{generator_forward.1} parent=27 // pred_check_branch
          %380 = sbr.rel (%p378) target = $region60
        $region59: #{generator_forward.1} parent=27 // pred_region
          %p381 = scmp.lt.s32.totalorder %s21, 0
          %s382 = scalar_select %p381, %s21, 0
          %s383 = smul.addr %s382, 3
          %s384 = smul.addr %s383, 8
          %s385 = scalar_lea.vmem %s2, %s384
        $region60: #{generator_forward.1} parent=27 // pred_fallthru
          _
      $region28: #{generator_forward.1} parent=5 // pred_fallthru
        _
      %p386 = scmp.le.s32.totalorder 2, %s12
      // Predicated region
      $region61: #{generator_forward.1} parent=5 // pred_check
        %p387 = pneg %p386
      $region62: #{generator_forward.1} parent=5 // pred_check_branch
        %389 = sbr.rel (%p387) target = $region64
      $region63: #{generator_forward.1} parent=5 // pred_region
        %s390 = ssub.s32 %s12, 2
      $region64: #{generator_forward.1} parent=5 // pred_fallthru
        _
    $region6: #{generator_forward.1} parent=1 // loop_footer
      %s16 = sadd.s32 1, %s12
    $region7: #{generator_forward.1} parent=1 // loop_footer_branch
      %11 = sbr.rel target = $region3
    $region8: #{generator_forward.1} parent=1 // loop_exit
      _
    %391 = vsyncpa [#allocation6], 1
    %s392 = scalar_lea.sflag [#allocation6], 1
    %393 = vsyncpa %s392, 1
    %394 = vsyncpa [#allocation8], 1
    %s395 = scalar_lea.sflag [#allocation8], 1
    %396 = vsyncpa %s395, 1

</llo_original>
